<compile_context>
chip_gen: v5e
topology: v5e:2x2
jax: 0.10.0
libtpu: 0.0.40
codegen_flags: <defaults>
</compile_context>

<pallas_src>
import functools

import jax
import jax.numpy as jnp
from jax import lax
from jax.experimental import pallas as pl
from jax.experimental.pallas import tpu as pltpu


def _preact_block_kernel(x_ref, bn1_ref, b2_ref, w1_ref, w2_ref, out_ref,
                         xp_ref, yp_ref, *, H, W, Cin, Cout, K1p, K2p):
    """B_blk images per step, fully fused:
       relu(bn1(x)) -> [conv1 (+folded bn2 scale) | 1x1 shortcut] as 3 accumulating dots
                    -> +bn2 shift -> relu -> conv2 as 3 accumulating dots -> + shortcut."""
    B = x_ref.shape[0]
    M = B * H
    WC_out = W * Cout
    cdt = w1_ref.dtype                                   # MXU operand dtype (f32 or bf16)

    # ---- bn1 (folded affine, tiled over W) + ReLU on the row-packed (B, H, W*Cin) block ----
    y1 = jnp.maximum(x_ref[...] * bn1_ref[0:1, :] + bn1_ref[1:2, :], 0.0)

    # ---- stage-1 padded LHS in VMEM scratch -------------------------------------------------
    # Per-row lane layout: [Cin zero lanes | W*Cin data | Cin zero lanes | zero pad to K1p];
    # one zero halo row above/below each image.  Zero-fill + interior store is a couple of
    # cheap vst's and avoids any lane-concat relayout (and any HBM padding pass).
    xp_ref[...] = jnp.zeros_like(xp_ref)
    xp_ref[:, 1:H + 1, Cin:Cin + W * Cin] = y1

    # ---- conv1 (+ folded bn2 scale) | 1x1 shortcut: 3 accumulating MXU dots (one per ky) ----
    acc = jnp.dot(xp_ref[:, 0:H, :].reshape(M, K1p).astype(cdt), w1_ref[0],
                  preferred_element_type=jnp.float32)               # (M, 2*W*Cout)
    for ky in (1, 2):
        lhs = xp_ref[:, ky:ky + H, :].reshape(M, K1p).astype(cdt)   # sublane-only slice
        acc = acc + jnp.dot(lhs, w1_ref[ky], preferred_element_type=jnp.float32)

    y2 = jnp.maximum(acc[:, :WC_out] + b2_ref[0:1, :], 0.0)         # bn2 shift + ReLU
    sc = acc[:, WC_out:]                                            # 1x1 shortcut branch

    # ---- stage-2 padded LHS ------------------------------------------------------------------
    yp_ref[...] = jnp.zeros_like(yp_ref)
    yp_ref[:, 1:H + 1, Cout:Cout + WC_out] = y2.reshape(B, H, WC_out)

    # ---- conv2: 3 accumulating MXU dots, then residual add -----------------------------------
    out = sc
    for ky in range(3):
        lhs = yp_ref[:, ky:ky + H, :].reshape(M, K2p).astype(cdt)
        out = out + jnp.dot(lhs, w2_ref[ky], preferred_element_type=jnp.float32)

    # Lane-dense store: last dim W*Cout (= 128 here) -> unmasked vst.
    out_ref[...] = out.reshape(B, H, WC_out).astype(out_ref.dtype)


def _conv3x3_toeplitz_blocks(w_hwio, W, k_pad):
    """(3,3,Ci,Co) HWIO -> (3, k_pad, W*Co): per-ky block-Toeplitz weights so a 3x3 'same'
    conv over a zero-padded row-packed row becomes one matmul per ky. Rows beyond (W+2)*Ci
    are zero (they multiply the zero K-pad lanes of the LHS)."""
    _, _, Ci, Co = w_hwio.shape
    Wp = W + 2
    blocks = []
    for ky in range(3):
        m = jnp.zeros((Wp, Ci, W, Co), jnp.float32)
        for kx in range(3):
            sel = jnp.eye(Wp, W, k=-kx, dtype=jnp.float32)   # sel[xin, x] = 1 iff xin == x + kx
            m = m + sel[:, None, :, None] * w_hwio[ky, kx][None, :, None, :]
        b = m.reshape(Wp * Ci, W * Co)
        blocks.append(jnp.pad(b, ((0, k_pad - Wp * Ci), (0, 0))))
    return jnp.stack(blocks, axis=0)                          # (3, k_pad, W*Co)


def _shortcut1x1_blocks(ws_hwio, W, k_pad):
    """(1,1,Ci,Co) HWIO -> (3, k_pad, W*Co): 1x1 shortcut as the centre tap of the ky=1 block
    (ky=0 / ky=2 blocks are zero), so it rides in the same first dot as conv1."""
    _, _, Ci, Co = ws_hwio.shape
    Wp = W + 2
    sel = jnp.eye(Wp, W, k=-1, dtype=jnp.float32)             # centre tap: xin == x + 1
    m = (sel[:, None, :, None] * ws_hwio[0, 0][None, :, None, :]).reshape(Wp * Ci, W * Co)
    m = jnp.pad(m, ((0, k_pad - Wp * Ci), (0, 0)))
    zero = jnp.zeros_like(m)
    return jnp.stack([zero, m, zero], axis=0)                 # (3, k_pad, W*Co)


def preact_block_forward_nhwc(x_nhwc, params, *, compute_dtype=jnp.float32, block_batch=None):
    """PreActBlock forward (stride=1, conv shortcut). NHWC in / NHWC out (no HBM transposes)."""
    N, H, W, Cin = x_nhwc.shape
    Cout = params["conv1_w"].shape[0]
    Wp = W + 2
    eps = 1e-5

    # ---- fold BatchNorm (inference semantics) into per-channel affines ----------------------
    s1 = params["bn1_gamma"] / jnp.sqrt(params["bn1_var"] + eps)
    b1 = params["bn1_beta"] - params["bn1_mean"] * s1
    s2 = params["bn2_gamma"] / jnp.sqrt(params["bn2_var"] + eps)
    b2 = params["bn2_beta"] - params["bn2_mean"] * s2

    bn1_sb = jnp.stack([jnp.tile(s1, W), jnp.tile(b1, W)]).astype(jnp.float32)   # (2, W*Cin)
    b2_row = jnp.tile(b2, W)[None, :].astype(jnp.float32)                        # (1, W*Cout)

    # ---- lane-aligned K for both stages (zero rows baked into the weights) ------------------
    K1p = ((Wp * Cin + 127) // 128) * 128
    K2p = ((Wp * Cout + 127) // 128) * 128

    w1_hwio = jnp.transpose(params["conv1_w"], (2, 3, 1, 0)) * s2                # bn2 scale folded
    ws_hwio = jnp.transpose(params["shortcut_w"], (2, 3, 1, 0))
    w2_hwio = jnp.transpose(params["conv2_w"], (2, 3, 1, 0))

    w1 = jnp.concatenate([_conv3x3_toeplitz_blocks(w1_hwio, W, K1p),
                          _shortcut1x1_blocks(ws_hwio, W, K1p)],
                         axis=2).astype(compute_dtype)                           # (3, K1p, 2*W*Cout)
    w2 = _conv3x3_toeplitz_blocks(w2_hwio, W, K2p).astype(compute_dtype)         # (3, K2p, W*Cout)

    # ---- batch blocking: fill the MXU's M dimension (M = block_batch * H) --------------------
    # Target ~128 rows (v5e sweet spot; on v6e/v7x pass block_batch for ~256 when N allows).
    if block_batch is None:
        block_batch = max(1, min(N, max(1, 128 // H)))
    nb = (N + block_batch - 1) // block_batch
    Np = nb * block_batch

    x = x_nhwc.astype(jnp.float32).reshape(N, H, W * Cin)        # free reshape, no transpose
    if Np != N:
        x = jnp.pad(x, ((0, Np - N), (0, 0), (0, 0)))

    kernel = functools.partial(_preact_block_kernel, H=H, W=W, Cin=Cin, Cout=Cout,
                               K1p=K1p, K2p=K2p)
    out = pl.pallas_call(
        kernel,
        out_shape=jax.ShapeDtypeStruct((Np, H, W * Cout), jnp.float32),
        grid=(nb,),
        in_specs=[
            pl.BlockSpec((block_batch, H, W * Cin), lambda n: (n, 0, 0)),
            pl.BlockSpec((2, W * Cin), lambda n: (0, 0)),
            pl.BlockSpec((1, W * Cout), lambda n: (0, 0)),
            pl.BlockSpec((3, K1p, 2 * W * Cout), lambda n: (0, 0, 0)),   # grid-invariant weights
            pl.BlockSpec((3, K2p, W * Cout), lambda n: (0, 0, 0)),
        ],
        out_specs=pl.BlockSpec((block_batch, H, W * Cout), lambda n: (n, 0, 0)),
        scratch_shapes=[
            pltpu.VMEM((block_batch, H + 2, K1p), jnp.float32),   # stage-1 padded LHS
            pltpu.VMEM((block_batch, H + 2, K2p), jnp.float32),   # stage-2 padded LHS
        ],
        compiler_params=pltpu.CompilerParams(
            dimension_semantics=("parallel",),
            vmem_limit_bytes=32 * 1024 * 1024,
        ),
    )(x, bn1_sb, b2_row, w1, w2)

    if Np != N:
        out = out[:N]
    return out.reshape(N, H, W, Cout)


def preact_block_forward_nchw(x_nchw, params, **kw):
    """PyTorch-layout (NCHW) adapter.  Prefer the NHWC entry point: these two transposes are
    extra HBM passes that can cost as much as the kernel itself for this small block."""
    out = preact_block_forward_nhwc(jnp.transpose(x_nchw, (0, 2, 3, 1)), params, **kw)
    return jnp.transpose(out, (0, 3, 1, 2))


def preact_block_reference_nhwc(x, params):
    """Pure-JAX NHWC reference (same eval-mode BN semantics) for the correctness check."""
    eps = 1e-5

    def bn(t, g, b, m, v):
        return (t - m) / jnp.sqrt(v + eps) * g + b        # channels-last: direct broadcast

    dn = ("NHWC", "HWIO", "NHWC")
    w1 = jnp.transpose(params["conv1_w"], (2, 3, 1, 0))
    w2 = jnp.transpose(params["conv2_w"], (2, 3, 1, 0))
    ws = jnp.transpose(params["shortcut_w"], (2, 3, 1, 0))

    out = jax.nn.relu(bn(x, params["bn1_gamma"], params["bn1_beta"],
                         params["bn1_mean"], params["bn1_var"]))
    sc = lax.conv_general_dilated(out, ws, (1, 1), "VALID", dimension_numbers=dn)
    h = lax.conv_general_dilated(out, w1, (1, 1), ((1, 1), (1, 1)), dimension_numbers=dn)
    h = jax.nn.relu(bn(h, params["bn2_gamma"], params["bn2_beta"],
                       params["bn2_mean"], params["bn2_var"]))
    o = lax.conv_general_dilated(h, w2, (1, 1), ((1, 1), (1, 1)), dimension_numbers=dn)
    return o + sc


if __name__ == "__main__":
    N, Cin, Cout, H, W = 2, 4, 8, 16, 16   # in_planes=4, planes=8, stride=1 (conv shortcut exists)
    key = jax.random.PRNGKey(0)
    ks = jax.random.split(key, 12)
    params = {
        "bn1_gamma": jax.random.uniform(ks[0], (Cin,), jnp.float32, 0.5, 1.5),
        "bn1_beta": jax.random.normal(ks[1], (Cin,), jnp.float32) * 0.1,
        "bn1_mean": jax.random.normal(ks[2], (Cin,), jnp.float32) * 0.1,
        "bn1_var": jax.random.uniform(ks[3], (Cin,), jnp.float32, 0.5, 1.5),
        "conv1_w": jax.random.normal(ks[4], (Cout, Cin, 3, 3), jnp.float32) * 0.1,
        "bn2_gamma": jax.random.uniform(ks[5], (Cout,), jnp.float32, 0.5, 1.5),
        "bn2_beta": jax.random.normal(ks[6], (Cout,), jnp.float32) * 0.1,
        "bn2_mean": jax.random.normal(ks[7], (Cout,), jnp.float32) * 0.1,
        "bn2_var": jax.random.uniform(ks[8], (Cout,), jnp.float32, 0.5, 1.5),
        "conv2_w": jax.random.normal(ks[9], (Cout, Cout, 3, 3), jnp.float32) * 0.1,
        "shortcut_w": jax.random.normal(ks[10], (Cout, Cin, 1, 1), jnp.float32) * 0.1,
    }
    x_nhwc = jax.random.normal(ks[11], (N, H, W, Cin), jnp.float32)

    ref = jax.block_until_ready(preact_block_reference_nhwc(x_nhwc, params))

    # f32 MXU operands: strict check against the f32 reference.
    out = jax.block_until_ready(preact_block_forward_nhwc(x_nhwc, params))
    assert out.shape == (N, H, W, Cout), out.shape
    err = float(jnp.max(jnp.abs(out - ref)))
    assert err < 1e-3, f"f32 mismatch vs reference: max abs err = {err}"

    # bf16 MXU operands (recommended on v6e/v7x): loose check only (bf16 rel. precision ~2^-8).
    out_bf16 = jax.block_until_ready(
        preact_block_forward_nhwc(x_nhwc, params, compute_dtype=jnp.bfloat16))
    err_bf16 = float(jnp.max(jnp.abs(out_bf16 - ref)))
    assert err_bf16 < 5e-2, f"bf16 mismatch vs reference: max abs err = {err_bf16}"

    print("KERNEL_OK")
</pallas_src>

<mosaic_0001>
module attributes {stable_mosaic.version = 11 : i64} {
  func.func @_preact_block_kernel(%arg0: i32, %arg1: memref<2x16x64xf32, #tpu.memory_space<vmem>>, %arg2: memref<2x64xf32, #tpu.memory_space<vmem>>, %arg3: memref<1x128xf32, #tpu.memory_space<vmem>>, %arg4: memref<3x128x256xf32, #tpu.memory_space<vmem>>, %arg5: memref<3x256x128xf32, #tpu.memory_space<vmem>>, %arg6: memref<2x16x128xf32, #tpu.memory_space<vmem>>, %arg7: memref<2x18x128xf32, #tpu.memory_space<vmem>>, %arg8: memref<2x18x256xf32, #tpu.memory_space<vmem>>) attributes {dimension_semantics = [#tpu.dimension_semantics<parallel>], iteration_bounds = array<i64: 1>, scalar_prefetch = 0 : i64, scratch_operands = 2 : i64, tpu.core_type = #tpu.core_type<tc>, window_params = [{transform_indices = @transform_0, window_bounds = array<i64: 2, 16, 64>}, {pipeline_mode = #tpu.pipeline_mode<synchronous>, transform_indices = @transform_1, window_bounds = array<i64: 2, 64>}, {pipeline_mode = #tpu.pipeline_mode<synchronous>, transform_indices = @transform_2, window_bounds = array<i64: 1, 128>}, {pipeline_mode = #tpu.pipeline_mode<synchronous>, transform_indices = @transform_3, window_bounds = array<i64: 3, 128, 256>}, {pipeline_mode = #tpu.pipeline_mode<synchronous>, transform_indices = @transform_4, window_bounds = array<i64: 3, 256, 128>}, {transform_indices = @transform_5, window_bounds = array<i64: 2, 16, 128>}]} {
    %c0 = arith.constant 0 : index
    %c0_0 = arith.constant 0 : index
    %c0_1 = arith.constant 0 : index
    %0 = vector.load %arg1[%c0, %c0_0, %c0_1] : memref<2x16x64xf32, #tpu.memory_space<vmem>>, vector<2x16x64xf32>
    %c0_2 = arith.constant 0 : index
    %c0_3 = arith.constant 0 : index
    %1 = vector.load %arg2[%c0_2, %c0_3] : memref<2x64xf32, #tpu.memory_space<vmem>>, vector<1x64xf32>
    %2 = vector.shape_cast %1 : vector<1x64xf32> to vector<1x1x64xf32>
    %3 = vector.broadcast %2 : vector<1x1x64xf32> to vector<2x16x64xf32>
    %4 = arith.mulf %0, %3 : vector<2x16x64xf32>
    %c1 = arith.constant 1 : index
    %c0_4 = arith.constant 0 : index
    %5 = vector.load %arg2[%c1, %c0_4] : memref<2x64xf32, #tpu.memory_space<vmem>>, vector<1x64xf32>
    %6 = vector.shape_cast %5 : vector<1x64xf32> to vector<1x1x64xf32>
    %7 = vector.broadcast %6 : vector<1x1x64xf32> to vector<2x16x64xf32>
    %8 = arith.addf %4, %7 : vector<2x16x64xf32>
    %cst = arith.constant 0.000000e+00 : f32
    %9 = vector.broadcast %cst : f32 to vector<2x16x64xf32>
    %10 = arith.maximumf %8, %9 : vector<2x16x64xf32>
    %cst_5 = arith.constant 0.000000e+00 : f32
    %11 = vector.broadcast %cst_5 : f32 to vector<2x18x128xf32>
    %c0_6 = arith.constant 0 : index
    %c0_7 = arith.constant 0 : index
    %c0_8 = arith.constant 0 : index
    %12 = vector.load %arg7[%c0_6, %c0_7, %c0_8] : memref<2x18x128xf32, #tpu.memory_space<vmem>>, vector<2x18x128xf32>
    tpu.vector_store %arg7[%c0_6, %c0_7, %c0_8], %11 {strides = array<i32>} : memref<2x18x128xf32, #tpu.memory_space<vmem>>, vector<2x18x128xf32>,
    %c0_9 = arith.constant 0 : index
    %c1_10 = arith.constant 1 : index
    %c4 = arith.constant 4 : index
    %13 = vector.load %arg7[%c0_9, %c1_10, %c4] : memref<2x18x128xf32, #tpu.memory_space<vmem>>, vector<2x16x64xf32>
    tpu.vector_store %arg7[%c0_9, %c1_10, %c4], %10 {strides = array<i32>} : memref<2x18x128xf32, #tpu.memory_space<vmem>>, vector<2x16x64xf32>,
    %c0_11 = arith.constant 0 : index
    %c0_12 = arith.constant 0 : index
    %c0_13 = arith.constant 0 : index
    %14 = vector.load %arg7[%c0_11, %c0_12, %c0_13] : memref<2x18x128xf32, #tpu.memory_space<vmem>>, vector<2x16x128xf32>
    %15 = vector.shape_cast %14 : vector<2x16x128xf32> to vector<32x128xf32>
    %c0_14 = arith.constant 0 : index
    %c0_15 = arith.constant 0 : index
    %c0_16 = arith.constant 0 : index
    %16 = vector.load %arg4[%c0_14, %c0_15, %c0_16] : memref<3x128x256xf32, #tpu.memory_space<vmem>>, vector<1x128x256xf32>
    %17 = vector.shape_cast %16 : vector<1x128x256xf32> to vector<128x256xf32>
    %cst_17 = arith.constant dense<0.000000e+00> : vector<32x256xf32>
    %18 = tpu.matmul %15, %17, %cst_17 {dimension_numbers = #tpu.dot_dimension_numbers<[1], [0], [0], [1], [0, 0, 1, 1], [], []>} : vector<32x128xf32>, vector<128x256xf32>, vector<32x256xf32> -> vector<32x256xf32>
    %c0_18 = arith.constant 0 : index
    %c1_19 = arith.constant 1 : index
    %c0_20 = arith.constant 0 : index
    %19 = vector.load %arg7[%c0_18, %c1_19, %c0_20] : memref<2x18x128xf32, #tpu.memory_space<vmem>>, vector<2x16x128xf32>
    %20 = vector.shape_cast %19 : vector<2x16x128xf32> to vector<32x128xf32>
    %c1_21 = arith.constant 1 : index
    %c0_22 = arith.constant 0 : index
    %c0_23 = arith.constant 0 : index
    %21 = vector.load %arg4[%c1_21, %c0_22, %c0_23] : memref<3x128x256xf32, #tpu.memory_space<vmem>>, vector<1x128x256xf32>
    %22 = vector.shape_cast %21 : vector<1x128x256xf32> to vector<128x256xf32>
    %cst_24 = arith.constant dense<0.000000e+00> : vector<32x256xf32>
    %23 = tpu.matmul %20, %22, %cst_24 {dimension_numbers = #tpu.dot_dimension_numbers<[1], [0], [0], [1], [0, 0, 1, 1], [], []>} : vector<32x128xf32>, vector<128x256xf32>, vector<32x256xf32> -> vector<32x256xf32>
    %24 = arith.addf %18, %23 : vector<32x256xf32>
    %c0_25 = arith.constant 0 : index
    %c2 = arith.constant 2 : index
    %c0_26 = arith.constant 0 : index
    %25 = vector.load %arg7[%c0_25, %c2, %c0_26] : memref<2x18x128xf32, #tpu.memory_space<vmem>>, vector<2x16x128xf32>
    %26 = vector.shape_cast %25 : vector<2x16x128xf32> to vector<32x128xf32>
    %c2_27 = arith.constant 2 : index
    %c0_28 = arith.constant 0 : index
    %c0_29 = arith.constant 0 : index
    %27 = vector.load %arg4[%c2_27, %c0_28, %c0_29] : memref<3x128x256xf32, #tpu.memory_space<vmem>>, vector<1x128x256xf32>
    %28 = vector.shape_cast %27 : vector<1x128x256xf32> to vector<128x256xf32>
    %cst_30 = arith.constant dense<0.000000e+00> : vector<32x256xf32>
    %29 = tpu.matmul %26, %28, %cst_30 {dimension_numbers = #tpu.dot_dimension_numbers<[1], [0], [0], [1], [0, 0, 1, 1], [], []>} : vector<32x128xf32>, vector<128x256xf32>, vector<32x256xf32> -> vector<32x256xf32>
    %30 = arith.addf %24, %29 : vector<32x256xf32>
    %31 = vector.extract_strided_slice %30 {offsets = [0, 0], sizes = [32, 128], strides = [1, 1]} : vector<32x256xf32> to vector<32x128xf32>
    %c0_31 = arith.constant 0 : index
    %c0_32 = arith.constant 0 : index
    %32 = vector.load %arg3[%c0_31, %c0_32] : memref<1x128xf32, #tpu.memory_space<vmem>>, vector<1x128xf32>
    %33 = vector.broadcast %32 : vector<1x128xf32> to vector<32x128xf32>
    %34 = arith.addf %31, %33 : vector<32x128xf32>
    %cst_33 = arith.constant 0.000000e+00 : f32
    %35 = vector.broadcast %cst_33 : f32 to vector<32x128xf32>
    %36 = arith.maximumf %34, %35 : vector<32x128xf32>
    %37 = vector.extract_strided_slice %30 {offsets = [0, 128], sizes = [32, 128], strides = [1, 1]} : vector<32x256xf32> to vector<32x128xf32>
    %cst_34 = arith.constant 0.000000e+00 : f32
    %38 = vector.broadcast %cst_34 : f32 to vector<2x18x256xf32>
    %c0_35 = arith.constant 0 : index
    %c0_36 = arith.constant 0 : index
    %c0_37 = arith.constant 0 : index
    %39 = vector.load %arg8[%c0_35, %c0_36, %c0_37] : memref<2x18x256xf32, #tpu.memory_space<vmem>>, vector<2x18x256xf32>
    tpu.vector_store %arg8[%c0_35, %c0_36, %c0_37], %38 {strides = array<i32>} : memref<2x18x256xf32, #tpu.memory_space<vmem>>, vector<2x18x256xf32>,
    %40 = vector.shape_cast %36 : vector<32x128xf32> to vector<2x16x128xf32>
    %c0_38 = arith.constant 0 : index
    %c1_39 = arith.constant 1 : index
    %c8 = arith.constant 8 : index
    %41 = vector.load %arg8[%c0_38, %c1_39, %c8] : memref<2x18x256xf32, #tpu.memory_space<vmem>>, vector<2x16x128xf32>
    tpu.vector_store %arg8[%c0_38, %c1_39, %c8], %40 {strides = array<i32>} : memref<2x18x256xf32, #tpu.memory_space<vmem>>, vector<2x16x128xf32>,
    %c0_40 = arith.constant 0 : index
    %c0_41 = arith.constant 0 : index
    %c0_42 = arith.constant 0 : index
    %42 = vector.load %arg8[%c0_40, %c0_41, %c0_42] : memref<2x18x256xf32, #tpu.memory_space<vmem>>, vector<2x16x256xf32>
    %43 = vector.shape_cast %42 : vector<2x16x256xf32> to vector<32x256xf32>
    %c0_43 = arith.constant 0 : index
    %c0_44 = arith.constant 0 : index
    %c0_45 = arith.constant 0 : index
    %44 = vector.load %arg5[%c0_43, %c0_44, %c0_45] : memref<3x256x128xf32, #tpu.memory_space<vmem>>, vector<1x256x128xf32>
    %45 = vector.shape_cast %44 : vector<1x256x128xf32> to vector<256x128xf32>
    %cst_46 = arith.constant dense<0.000000e+00> : vector<32x128xf32>
    %46 = tpu.matmul %43, %45, %cst_46 {dimension_numbers = #tpu.dot_dimension_numbers<[1], [0], [0], [1], [0, 0, 1, 1], [], []>} : vector<32x256xf32>, vector<256x128xf32>, vector<32x128xf32> -> vector<32x128xf32>
    %47 = arith.addf %37, %46 : vector<32x128xf32>
    %c0_47 = arith.constant 0 : index
    %c1_48 = arith.constant 1 : index
    %c0_49 = arith.constant 0 : index
    %48 = vector.load %arg8[%c0_47, %c1_48, %c0_49] : memref<2x18x256xf32, #tpu.memory_space<vmem>>, vector<2x16x256xf32>
    %49 = vector.shape_cast %48 : vector<2x16x256xf32> to vector<32x256xf32>
    %c1_50 = arith.constant 1 : index
    %c0_51 = arith.constant 0 : index
    %c0_52 = arith.constant 0 : index
    %50 = vector.load %arg5[%c1_50, %c0_51, %c0_52] : memref<3x256x128xf32, #tpu.memory_space<vmem>>, vector<1x256x128xf32>
    %51 = vector.shape_cast %50 : vector<1x256x128xf32> to vector<256x128xf32>
    %cst_53 = arith.constant dense<0.000000e+00> : vector<32x128xf32>
    %52 = tpu.matmul %49, %51, %cst_53 {dimension_numbers = #tpu.dot_dimension_numbers<[1], [0], [0], [1], [0, 0, 1, 1], [], []>} : vector<32x256xf32>, vector<256x128xf32>, vector<32x128xf32> -> vector<32x128xf32>
    %53 = arith.addf %47, %52 : vector<32x128xf32>
    %c0_54 = arith.constant 0 : index
    %c2_55 = arith.constant 2 : index
    %c0_56 = arith.constant 0 : index
    %54 = vector.load %arg8[%c0_54, %c2_55, %c0_56] : memref<2x18x256xf32, #tpu.memory_space<vmem>>, vector<2x16x256xf32>
    %55 = vector.shape_cast %54 : vector<2x16x256xf32> to vector<32x256xf32>
    %c2_57 = arith.constant 2 : index
    %c0_58 = arith.constant 0 : index
    %c0_59 = arith.constant 0 : index
    %56 = vector.load %arg5[%c2_57, %c0_58, %c0_59] : memref<3x256x128xf32, #tpu.memory_space<vmem>>, vector<1x256x128xf32>
    %57 = vector.shape_cast %56 : vector<1x256x128xf32> to vector<256x128xf32>
    %cst_60 = arith.constant dense<0.000000e+00> : vector<32x128xf32>
    %58 = tpu.matmul %55, %57, %cst_60 {dimension_numbers = #tpu.dot_dimension_numbers<[1], [0], [0], [1], [0, 0, 1, 1], [], []>} : vector<32x256xf32>, vector<256x128xf32>, vector<32x128xf32> -> vector<32x128xf32>
    %59 = arith.addf %53, %58 : vector<32x128xf32>
    %60 = vector.shape_cast %59 : vector<32x128xf32> to vector<2x16x128xf32>
    %c0_61 = arith.constant 0 : index
    %c0_62 = arith.constant 0 : index
    %c0_63 = arith.constant 0 : index
    %61 = vector.load %arg6[%c0_61, %c0_62, %c0_63] : memref<2x16x128xf32, #tpu.memory_space<vmem>>, vector<2x16x128xf32>
    tpu.vector_store %arg6[%c0_61, %c0_62, %c0_63], %60 {strides = array<i32>} : memref<2x16x128xf32, #tpu.memory_space<vmem>>, vector<2x16x128xf32>,
    return
  }
  func.func @transform_0(%arg0: i32) -> (i32, i32, i32) {
    %c0_i32 = arith.constant 0 : i32
    %c0_i32_0 = arith.constant 0 : i32
    %c0_i32_1 = arith.constant 0 : i32
    return %arg0, %c0_i32, %c0_i32_0 : i32, i32, i32
  }
  func.func @transform_1(%arg0: i32) -> (i32, i32) {
    %c0_i32 = arith.constant 0 : i32
    %c0_i32_0 = arith.constant 0 : i32
    %c0_i32_1 = arith.constant 0 : i32
    return %c0_i32, %c0_i32_0 : i32, i32
  }
  func.func @transform_2(%arg0: i32) -> (i32, i32) {
    %c0_i32 = arith.constant 0 : i32
    %c0_i32_0 = arith.constant 0 : i32
    %c0_i32_1 = arith.constant 0 : i32
    return %c0_i32, %c0_i32_0 : i32, i32
  }
  func.func @transform_3(%arg0: i32) -> (i32, i32, i32) {
    %c0_i32 = arith.constant 0 : i32
    %c0_i32_0 = arith.constant 0 : i32
    %c0_i32_1 = arith.constant 0 : i32
    %c0_i32_2 = arith.constant 0 : i32
    return %c0_i32, %c0_i32_0, %c0_i32_1 : i32, i32, i32
  }
  func.func @transform_4(%arg0: i32) -> (i32, i32, i32) {
    %c0_i32 = arith.constant 0 : i32
    %c0_i32_0 = arith.constant 0 : i32
    %c0_i32_1 = arith.constant 0 : i32
    %c0_i32_2 = arith.constant 0 : i32
    return %c0_i32, %c0_i32_0, %c0_i32_1 : i32, i32, i32
  }
  func.func @transform_5(%arg0: i32) -> (i32, i32, i32) {
    %c0_i32 = arith.constant 0 : i32
    %c0_i32_0 = arith.constant 0 : i32
    %c0_i32_1 = arith.constant 0 : i32
    return %arg0, %c0_i32, %c0_i32_0 : i32, i32, i32
  }
}

</mosaic_0001>

<llo_original>
// kernel: tpu_custom_call.1
$region0: #{tpu_custom_call.1}
  #allocation0 [shape = 'u32[]', space=smem, size = 0x4, offset = 0x4, fixed_abs, tag = 'smem constant byte address 0x4 - core index']
  #allocation1 [shape = 'u32[72,128]{1,0:T(1,128)}', space=vmem, size = 0x9000, scoped, tag = 'internal scratch']
  #allocation2 [shape = 'f32[2,18,128]{2,1,0:T(8,128)}', space=vmem, size = 0x6000, scoped, tag = 'scratch operand']
  #allocation3 [shape = 'f32[2,18,256]{2,1,0:T(8,128)}', space=vmem, size = 0xc000, scoped, tag = 'scratch operand']
  %s0 = inlined_call_operand.hbm [shape: f32[2,16,64], index: 0, kind: input, shape index: {}]
  %s1 = inlined_call_operand.hbm [shape: f32[2,64], index: 1, kind: input, shape index: {}]
  %s2 = inlined_call_operand.vmem [shape: f32[1,128], index: 2, kind: input, shape index: {}]
  %s3 = inlined_call_operand.hbm [shape: f32[3,128,256], index: 3, kind: input, shape index: {}]
  %s4 = inlined_call_operand.hbm [shape: f32[3,256,128], index: 4, kind: input, shape index: {}]
  %s5 = inlined_call_operand.hbm [shape: f32[2,16,128], index: 5, kind: output, shape index: {}]
  %s6 = sld [smem:[#allocation0]]
  $region46: #{tpu_custom_call.1} parent=0
    _
  %s8 = ssub.s32 1, %s6
  %s9 = scalar_select 0, %s8, %s6
  $region1: #{tpu_custom_call.1} parent=0
    #allocation4 [shape = 'u8[16384]{0}', space=vmem, size = 0x4000, scoped, tag = 'input window, operand 0, single buffered']
    #allocation5 [shape = 's32[1]{0}', space=sflag, size = 0x4, scoped, tag = 'scoped memory for tpu_custom_call.1']
    #allocation6 [shape = 's32[1]{0}', space=sflag, size = 0x4, scoped, tag = 'scoped memory for tpu_custom_call.1']
    #allocation7 [shape = 'u8[1024]{0}', space=vmem, size = 0x400, scoped, tag = 'input window, operand 1, single buffered']
    #allocation8 [shape = 's32[1]{0}', space=sflag, size = 0x4, scoped, tag = 'scoped memory for tpu_custom_call.1']
    #allocation9 [shape = 'u8[393216]{0}', space=vmem, size = 0x60000, scoped, tag = 'input window, operand 3, single buffered']
    #allocation10 [shape = 'u8[393216]{0}', space=vmem, size = 0x60000, scoped, tag = 'input window, operand 4, single buffered']
    #allocation11 [shape = 's32[1]{0}', space=sflag, size = 0x4, scoped, tag = 'scoped memory for tpu_custom_call.1']
    #allocation12 [shape = 'u8[16384]{0}', space=vmem, size = 0x4000, scoped, tag = 'output window, operand 0, single buffered']
    %10 = vsyncpa [#allocation5], 0
    %11 = vsyncpa [#allocation8], 0
    %12 = vsyncpa [#allocation11], 0
    %13 = vsyncpa [#allocation6], 0
    // Predicated region
    $region2: #{tpu_custom_call.1} parent=1 // pred_check
      _
    $region3: #{tpu_custom_call.1} parent=1 // pred_check_branch
      %15 = sbr.rel (0) target = $region5
    $region4: #{tpu_custom_call.1} parent=1 // pred_region
      %17 = vsyncadd [#allocation5], 0
      %s18 = sshll.u32 %s0, 4
      %s19 = int_to_ptr.hbm [resolvable:$true] %s18
      %s20 = sshll.u32 [#allocation4], 4
      %s21 = int_to_ptr.vmem [resolvable:$true] %s20
      %26 = dma.hbm_to_vmem [thread:$0]  %s19, 512, %s21, [#allocation5], 128, 128, 8
    $region5: #{tpu_custom_call.1} parent=1 // pred_fallthru
      _
    // Predicated region
    $region6: #{tpu_custom_call.1} parent=1 // pred_check
      _
    $region7: #{tpu_custom_call.1} parent=1 // pred_check_branch
      %28 = sbr.rel (0) target = $region9
    $region8: #{tpu_custom_call.1} parent=1 // pred_region
      %30 = vsyncadd [#allocation8], 0
      %s32 = sshll.u32 %s1, 4
      %s33 = int_to_ptr.hbm [resolvable:$true] %s32
      %s34 = sshll.u32 [#allocation7], 4
      %s35 = int_to_ptr.vmem [resolvable:$true] %s34
      %37 = dma.hbm_to_vmem [thread:$0]  %s33, 32, %s35, [#allocation8]
    $region9: #{tpu_custom_call.1} parent=1 // pred_fallthru
      _
    // Predicated region
    $region10: #{tpu_custom_call.1} parent=1 // pred_check
      _
    $region11: #{tpu_custom_call.1} parent=1 // pred_check_branch
      %39 = sbr.rel (0) target = $region13
    $region12: #{tpu_custom_call.1} parent=1 // pred_region
      _
    $region13: #{tpu_custom_call.1} parent=1 // pred_fallthru
      _
    // Predicated region
    $region14: #{tpu_custom_call.1} parent=1 // pred_check
      _
    $region15: #{tpu_custom_call.1} parent=1 // pred_check_branch
      %41 = sbr.rel (0) target = $region17
    $region16: #{tpu_custom_call.1} parent=1 // pred_region
      %43 = vsyncadd [#allocation8], 0
      %s44 = sshll.u32 %s3, 4
      %s45 = int_to_ptr.hbm [resolvable:$true] %s44
      %s46 = sshll.u32 [#allocation9], 4
      %s47 = int_to_ptr.vmem [resolvable:$true] %s46
      %52 = dma.hbm_to_vmem [thread:$0]  %s45, 12288, %s47, [#allocation8], 256, 256, 16
    $region17: #{tpu_custom_call.1} parent=1 // pred_fallthru
      _
    // Predicated region
    $region18: #{tpu_custom_call.1} parent=1 // pred_check
      _
    $region19: #{tpu_custom_call.1} parent=1 // pred_check_branch
      %54 = sbr.rel (0) target = $region21
    $region20: #{tpu_custom_call.1} parent=1 // pred_region
      %56 = vsyncadd [#allocation11], 0
      %s57 = sshll.u32 %s4, 4
      %s58 = int_to_ptr.hbm [resolvable:$true] %s57
      %s59 = sshll.u32 [#allocation10], 4
      %s60 = int_to_ptr.vmem [resolvable:$true] %s59
      %65 = dma.hbm_to_vmem [thread:$0]  %s58, 12288, %s60, [#allocation11], 128, 128, 8
    $region21: #{tpu_custom_call.1} parent=1 // pred_fallthru
      _
    // Predicated region
    $region22: #{tpu_custom_call.1} parent=1 // pred_check
      _
    $region23: #{tpu_custom_call.1} parent=1 // pred_check_branch
      %67 = sbr.rel (0) target = $region25
    $region24: #{tpu_custom_call.1} parent=1 // pred_region
      %69 = dma.done [#allocation5], 512
    $region25: #{tpu_custom_call.1} parent=1 // pred_fallthru
      _
    // Predicated region
    $region26: #{tpu_custom_call.1} parent=1 // pred_check
      _
    $region27: #{tpu_custom_call.1} parent=1 // pred_check_branch
      %71 = sbr.rel (0) target = $region29
    $region28: #{tpu_custom_call.1} parent=1 // pred_region
      %73 = dma.done [#allocation8], 32
    $region29: #{tpu_custom_call.1} parent=1 // pred_fallthru
      _
    // Predicated region
    $region30: #{tpu_custom_call.1} parent=1 // pred_check
      _
    $region31: #{tpu_custom_call.1} parent=1 // pred_check_branch
      %75 = sbr.rel (0) target = $region33
    $region32: #{tpu_custom_call.1} parent=1 // pred_region
      %77 = dma.done [#allocation8], 12288
    $region33: #{tpu_custom_call.1} parent=1 // pred_fallthru
      _
    // Predicated region
    $region34: #{tpu_custom_call.1} parent=1 // pred_check
      _
    $region35: #{tpu_custom_call.1} parent=1 // pred_check_branch
      %79 = sbr.rel (0) target = $region37
    $region36: #{tpu_custom_call.1} parent=1 // pred_region
      %81 = dma.done [#allocation11], 12288
    $region37: #{tpu_custom_call.1} parent=1 // pred_fallthru
      _
    %v82 = vld [vmem:[#allocation4] sm:$0xff]
    %v83 = vld [vmem:[#allocation4 + $0x8] sm:$0xff]
    %v84 = vld [vmem:[#allocation4 + $0x10] sm:$0xff]
    %v85 = vld [vmem:[#allocation4 + $0x18] sm:$0xff]
    %v86 = vld [vmem:[#allocation7] sm:$0x1]
    %v87 = vperm.slane %v86, 0
    %v88 = vmul.f32 %v82, %v87
    %v89 = vmul.f32 %v83, %v87
    %v90 = vmul.f32 %v84, %v87
    %v91 = vmul.f32 %v85, %v87
    %v92 = vld [vmem:[#allocation7 + $0x1] sm:$0x1]
    %v93 = vperm.slane %v92, 0
    %v94 = vadd.f32 %v88, %v93
    %v95 = vadd.f32 %v89, %v93
    %v96 = vadd.f32 %v90, %v93
    %v97 = vadd.f32 %v91, %v93
    %v98 = vmax.f32 %v94, 0.0
    %v99 = vmax.f32 %v95, 0.0
    %v100 = vmax.f32 %v96, 0.0
    %v101 = vmax.f32 %v97, 0.0
    %102 = vst [vmem:[#allocation2] sm:$0xff] 0.0
    %103 = vst [vmem:[#allocation2 + $0x8] sm:$0xff] 0.0
    %104 = vst [vmem:[#allocation2 + $0x10] sm:$0x3] 0.0
    %105 = vst [vmem:[#allocation2 + $0x18] sm:$0xff] 0.0
    %106 = vst [vmem:[#allocation2 + $0x20] sm:$0xff] 0.0
    %107 = vst [vmem:[#allocation2 + $0x28] sm:$0x3] 0.0
    %112 = vrot.lane.b32.xlu0 %v98, 4
    %v113 = vpop.permute.xlu0 %112
    %114 = vrot.lane.b32.xlu0 %v99, 4
    %v115 = vpop.permute.xlu0 %114
    %116 = vrot.lane.b32.xlu0 %v100, 4
    %v117 = vpop.permute.xlu0 %116
    %118 = vrot.lane.b32.xlu0 %v101, 4
    %v119 = vpop.permute.xlu0 %118
    %vm124 = vcmask 556064
    %125 = vst.msk [vmem:[#allocation2 + $0x1] sm:$0xff] %vm124, %v113
    %126 = vst.msk [vmem:[#allocation2 + $0x9] sm:$0xff] %vm124, %v115
    %127 = vst.msk [vmem:[#allocation2 + $0x19] sm:$0xff] %vm124, %v117
    %128 = vst.msk [vmem:[#allocation2 + $0x21] sm:$0xff] %vm124, %v119
    %v129 = vld [vmem:[#allocation2] sm:$0xff]
    %v130 = vld [vmem:[#allocation2 + $0x8] sm:$0xff]
    %v131 = vld [vmem:[#allocation2 + $0x18] sm:$0xff]
    %v132 = vld [vmem:[#allocation2 + $0x20] sm:$0xff]
    %v133 = vld [vmem:[#allocation9] sm:$0xff]
    %v134 = vld [vmem:[#allocation9 + $0x8] sm:$0xff]
    %v135 = vld [vmem:[#allocation9 + $0x10] sm:$0xff]
    %v136 = vld [vmem:[#allocation9 + $0x18] sm:$0xff]
    %v137 = vld [vmem:[#allocation9 + $0x20] sm:$0xff]
    %v138 = vld [vmem:[#allocation9 + $0x28] sm:$0xff]
    %v139 = vld [vmem:[#allocation9 + $0x30] sm:$0xff]
    %v140 = vld [vmem:[#allocation9 + $0x38] sm:$0xff]
    %v141 = vld [vmem:[#allocation9 + $0x40] sm:$0xff]
    %v142 = vld [vmem:[#allocation9 + $0x48] sm:$0xff]
    %v143 = vld [vmem:[#allocation9 + $0x50] sm:$0xff]
    %v144 = vld [vmem:[#allocation9 + $0x58] sm:$0xff]
    %v145 = vld [vmem:[#allocation9 + $0x60] sm:$0xff]
    %v146 = vld [vmem:[#allocation9 + $0x68] sm:$0xff]
    %v147 = vld [vmem:[#allocation9 + $0x70] sm:$0xff]
    %v148 = vld [vmem:[#allocation9 + $0x78] sm:$0xff]
    %v149 = vld [vmem:[#allocation9 + $0x80] sm:$0xff]
    %v150 = vld [vmem:[#allocation9 + $0x88] sm:$0xff]
    %v151 = vld [vmem:[#allocation9 + $0x90] sm:$0xff]
    %v152 = vld [vmem:[#allocation9 + $0x98] sm:$0xff]
    %v153 = vld [vmem:[#allocation9 + $0xa0] sm:$0xff]
    %v154 = vld [vmem:[#allocation9 + $0xa8] sm:$0xff]
    %v155 = vld [vmem:[#allocation9 + $0xb0] sm:$0xff]
    %v156 = vld [vmem:[#allocation9 + $0xb8] sm:$0xff]
    %v157 = vld [vmem:[#allocation9 + $0xc0] sm:$0xff]
    %v158 = vld [vmem:[#allocation9 + $0xc8] sm:$0xff]
    %v159 = vld [vmem:[#allocation9 + $0xd0] sm:$0xff]
    %v160 = vld [vmem:[#allocation9 + $0xd8] sm:$0xff]
    %v161 = vld [vmem:[#allocation9 + $0xe0] sm:$0xff]
    %v162 = vld [vmem:[#allocation9 + $0xe8] sm:$0xff]
    %v163 = vld [vmem:[#allocation9 + $0xf0] sm:$0xff]
    %v164 = vld [vmem:[#allocation9 + $0xf8] sm:$0xff]
    %v165 = vld [vmem:[#allocation2 + $0x1] sm:$0xff]
    %v166 = vld [vmem:[#allocation2 + $0x9] sm:$0xff]
    %v167 = vld [vmem:[#allocation2 + $0x19] sm:$0xff]
    %v168 = vld [vmem:[#allocation2 + $0x21] sm:$0xff]
    %s169 = scalar_lea.vmem [#allocation9], 256
    %v170 = vld [vmem:[%s169] sm:$0xff]
    %v171 = vld [vmem:[%s169 + $0x8] sm:$0xff]
    %v172 = vld [vmem:[%s169 + $0x10] sm:$0xff]
    %v173 = vld [vmem:[%s169 + $0x18] sm:$0xff]
    %v174 = vld [vmem:[%s169 + $0x20] sm:$0xff]
    %v175 = vld [vmem:[%s169 + $0x28] sm:$0xff]
    %v176 = vld [vmem:[%s169 + $0x30] sm:$0xff]
    %v177 = vld [vmem:[%s169 + $0x38] sm:$0xff]
    %v178 = vld [vmem:[%s169 + $0x40] sm:$0xff]
    %v179 = vld [vmem:[%s169 + $0x48] sm:$0xff]
    %v180 = vld [vmem:[%s169 + $0x50] sm:$0xff]
    %v181 = vld [vmem:[%s169 + $0x58] sm:$0xff]
    %v182 = vld [vmem:[%s169 + $0x60] sm:$0xff]
    %v183 = vld [vmem:[%s169 + $0x68] sm:$0xff]
    %v184 = vld [vmem:[%s169 + $0x70] sm:$0xff]
    %v185 = vld [vmem:[%s169 + $0x78] sm:$0xff]
    %v186 = vld [vmem:[%s169 + $0x80] sm:$0xff]
    %v187 = vld [vmem:[%s169 + $0x88] sm:$0xff]
    %v188 = vld [vmem:[%s169 + $0x90] sm:$0xff]
    %v189 = vld [vmem:[%s169 + $0x98] sm:$0xff]
    %v190 = vld [vmem:[%s169 + $0xa0] sm:$0xff]
    %v191 = vld [vmem:[%s169 + $0xa8] sm:$0xff]
    %v192 = vld [vmem:[%s169 + $0xb0] sm:$0xff]
    %v193 = vld [vmem:[%s169 + $0xb8] sm:$0xff]
    %v194 = vld [vmem:[%s169 + $0xc0] sm:$0xff]
    %v195 = vld [vmem:[%s169 + $0xc8] sm:$0xff]
    %v196 = vld [vmem:[%s169 + $0xd0] sm:$0xff]
    %v197 = vld [vmem:[%s169 + $0xd8] sm:$0xff]
    %v198 = vld [vmem:[%s169 + $0xe0] sm:$0xff]
    %v199 = vld [vmem:[%s169 + $0xe8] sm:$0xff]
    %v200 = vld [vmem:[%s169 + $0xf0] sm:$0xff]
    %v201 = vld [vmem:[%s169 + $0xf8] sm:$0xff]
    %202 = vmatpush.msra.mxu0 %v200
    %203 = vmatpush.msra.mxu0 %v198
    %204 = vmatpush.msra.mxu0 %v196
    %205 = vmatpush.msra.mxu0 %v194
    %206 = vmatpush.msra.mxu0 %v192
    %207 = vmatpush.msra.mxu0 %v190
    %208 = vmatpush.msra.mxu0 %v188
    %209 = vmatpush.msra.mxu0 %v186
    %210 = vmatpush.msra.mxu0 %v184
    %211 = vmatpush.msra.mxu0 %v182
    %212 = vmatpush.msra.mxu0 %v180
    %213 = vmatpush.msra.mxu0 %v178
    %214 = vmatpush.msra.mxu0 %v176
    %215 = vmatpush.msra.mxu0 %v174
    %216 = vmatpush.msra.mxu0 %v172
    %217 = vmatpush.msra.mxu0 %v170
    %218 = vmatmul.f32.gmra.mxu0 %v165
    %v219 = vpop.f32.mrf.mxu0
    %v220 = vadd.f32 0.0, %v219
    %221 = vmatmul.f32.gmra.mxu0 %v166
    %v222 = vpop.f32.mrf.mxu0
    %v223 = vadd.f32 0.0, %v222
    %224 = vmatmul.f32.gmra.mxu0 %v167
    %v225 = vpop.f32.mrf.mxu0
    %v226 = vadd.f32 0.0, %v225
    %227 = vmatmul.f32.gmra.mxu0 %v168
    %v228 = vpop.f32.mrf.mxu0
    %v229 = vadd.f32 0.0, %v228
    %230 = vdwg.mxu0
    %231 = vmatpush.msra.mxu0 %v201
    %232 = vmatpush.msra.mxu0 %v199
    %233 = vmatpush.msra.mxu0 %v197
    %234 = vmatpush.msra.mxu0 %v195
    %235 = vmatpush.msra.mxu0 %v193
    %236 = vmatpush.msra.mxu0 %v191
    %237 = vmatpush.msra.mxu0 %v189
    %238 = vmatpush.msra.mxu0 %v187
    %239 = vmatpush.msra.mxu0 %v185
    %240 = vmatpush.msra.mxu0 %v183
    %241 = vmatpush.msra.mxu0 %v181
    %242 = vmatpush.msra.mxu0 %v179
    %243 = vmatpush.msra.mxu0 %v177
    %244 = vmatpush.msra.mxu0 %v175
    %245 = vmatpush.msra.mxu0 %v173
    %246 = vmatpush.msra.mxu0 %v171
    %247 = vmatmul.f32.gmra.mxu0 %v165
    %v248 = vpop.f32.mrf.mxu0
    %v249 = vadd.f32 0.0, %v248
    %250 = vmatmul.f32.gmra.mxu0 %v166
    %v251 = vpop.f32.mrf.mxu0
    %v252 = vadd.f32 0.0, %v251
    %253 = vmatmul.f32.gmra.mxu0 %v167
    %v254 = vpop.f32.mrf.mxu0
    %v255 = vadd.f32 0.0, %v254
    %256 = vmatmul.f32.gmra.mxu0 %v168
    %v257 = vpop.f32.mrf.mxu0
    %v258 = vadd.f32 0.0, %v257
    %259 = vdwg.mxu0
    %260 = vmatpush.msra.mxu0 %v163
    %261 = vmatpush.msra.mxu0 %v161
    %262 = vmatpush.msra.mxu0 %v159
    %263 = vmatpush.msra.mxu0 %v157
    %264 = vmatpush.msra.mxu0 %v155
    %265 = vmatpush.msra.mxu0 %v153
    %266 = vmatpush.msra.mxu0 %v151
    %267 = vmatpush.msra.mxu0 %v149
    %268 = vmatpush.msra.mxu0 %v147
    %269 = vmatpush.msra.mxu0 %v145
    %270 = vmatpush.msra.mxu0 %v143
    %271 = vmatpush.msra.mxu0 %v141
    %272 = vmatpush.msra.mxu0 %v139
    %273 = vmatpush.msra.mxu0 %v137
    %274 = vmatpush.msra.mxu0 %v135
    %275 = vmatpush.msra.mxu0 %v133
    %276 = vmatmul.f32.gmra.mxu0 %v129
    %v277 = vpop.f32.mrf.mxu0
    %v278 = vadd.f32 %v220, %v277
    %279 = vmatmul.f32.gmra.mxu0 %v130
    %v280 = vpop.f32.mrf.mxu0
    %v281 = vadd.f32 %v223, %v280
    %282 = vmatmul.f32.gmra.mxu0 %v131
    %v283 = vpop.f32.mrf.mxu0
    %v284 = vadd.f32 %v226, %v283
    %285 = vmatmul.f32.gmra.mxu0 %v132
    %v286 = vpop.f32.mrf.mxu0
    %v287 = vadd.f32 %v229, %v286
    %288 = vdwg.mxu0
    %289 = vmatpush.msra.mxu0 %v164
    %290 = vmatpush.msra.mxu0 %v162
    %291 = vmatpush.msra.mxu0 %v160
    %292 = vmatpush.msra.mxu0 %v158
    %293 = vmatpush.msra.mxu0 %v156
    %294 = vmatpush.msra.mxu0 %v154
    %295 = vmatpush.msra.mxu0 %v152
    %296 = vmatpush.msra.mxu0 %v150
    %297 = vmatpush.msra.mxu0 %v148
    %298 = vmatpush.msra.mxu0 %v146
    %299 = vmatpush.msra.mxu0 %v144
    %300 = vmatpush.msra.mxu0 %v142
    %301 = vmatpush.msra.mxu0 %v140
    %302 = vmatpush.msra.mxu0 %v138
    %303 = vmatpush.msra.mxu0 %v136
    %304 = vmatpush.msra.mxu0 %v134
    %305 = vmatmul.f32.gmra.mxu0 %v129
    %v306 = vpop.f32.mrf.mxu0
    %v307 = vadd.f32 %v249, %v306
    %308 = vmatmul.f32.gmra.mxu0 %v130
    %v309 = vpop.f32.mrf.mxu0
    %v310 = vadd.f32 %v252, %v309
    %311 = vmatmul.f32.gmra.mxu0 %v131
    %v312 = vpop.f32.mrf.mxu0
    %v313 = vadd.f32 %v255, %v312
    %314 = vmatmul.f32.gmra.mxu0 %v132
    %v315 = vpop.f32.mrf.mxu0
    %v316 = vadd.f32 %v258, %v315
    %317 = vdwg.mxu0
    %v318 = vld [vmem:[#allocation2 + $0x2] sm:$0xff]
    %v319 = vld [vmem:[#allocation2 + $0xa] sm:$0xff]
    %v320 = vld [vmem:[#allocation2 + $0x1a] sm:$0xff]
    %v321 = vld [vmem:[#allocation2 + $0x22] sm:$0xff]
    %s322 = scalar_lea.vmem [#allocation9], 512
    %v323 = vld [vmem:[%s322] sm:$0xff]
    %v324 = vld [vmem:[%s322 + $0x8] sm:$0xff]
    %v325 = vld [vmem:[%s322 + $0x10] sm:$0xff]
    %v326 = vld [vmem:[%s322 + $0x18] sm:$0xff]
    %v327 = vld [vmem:[%s322 + $0x20] sm:$0xff]
    %v328 = vld [vmem:[%s322 + $0x28] sm:$0xff]
    %v329 = vld [vmem:[%s322 + $0x30] sm:$0xff]
    %v330 = vld [vmem:[%s322 + $0x38] sm:$0xff]
    %v331 = vld [vmem:[%s322 + $0x40] sm:$0xff]
    %v332 = vld [vmem:[%s322 + $0x48] sm:$0xff]
    %v333 = vld [vmem:[%s322 + $0x50] sm:$0xff]
    %v334 = vld [vmem:[%s322 + $0x58] sm:$0xff]
    %v335 = vld [vmem:[%s322 + $0x60] sm:$0xff]
    %v336 = vld [vmem:[%s322 + $0x68] sm:$0xff]
    %v337 = vld [vmem:[%s322 + $0x70] sm:$0xff]
    %v338 = vld [vmem:[%s322 + $0x78] sm:$0xff]
    %v339 = vld [vmem:[%s322 + $0x80] sm:$0xff]
    %v340 = vld [vmem:[%s322 + $0x88] sm:$0xff]
    %v341 = vld [vmem:[%s322 + $0x90] sm:$0xff]
    %v342 = vld [vmem:[%s322 + $0x98] sm:$0xff]
    %v343 = vld [vmem:[%s322 + $0xa0] sm:$0xff]
    %v344 = vld [vmem:[%s322 + $0xa8] sm:$0xff]
    %v345 = vld [vmem:[%s322 + $0xb0] sm:$0xff]
    %v346 = vld [vmem:[%s322 + $0xb8] sm:$0xff]
    %v347 = vld [vmem:[%s322 + $0xc0] sm:$0xff]
    %v348 = vld [vmem:[%s322 + $0xc8] sm:$0xff]
    %v349 = vld [vmem:[%s322 + $0xd0] sm:$0xff]
    %v350 = vld [vmem:[%s322 + $0xd8] sm:$0xff]
    %v351 = vld [vmem:[%s322 + $0xe0] sm:$0xff]
    %v352 = vld [vmem:[%s322 + $0xe8] sm:$0xff]
    %v353 = vld [vmem:[%s322 + $0xf0] sm:$0xff]
    %v354 = vld [vmem:[%s322 + $0xf8] sm:$0xff]
    %355 = vmatpush.msra.mxu0 %v353
    %356 = vmatpush.msra.mxu0 %v351
    %357 = vmatpush.msra.mxu0 %v349
    %358 = vmatpush.msra.mxu0 %v347
    %359 = vmatpush.msra.mxu0 %v345
    %360 = vmatpush.msra.mxu0 %v343
    %361 = vmatpush.msra.mxu0 %v341
    %362 = vmatpush.msra.mxu0 %v339
    %363 = vmatpush.msra.mxu0 %v337
    %364 = vmatpush.msra.mxu0 %v335
    %365 = vmatpush.msra.mxu0 %v333
    %366 = vmatpush.msra.mxu0 %v331
    %367 = vmatpush.msra.mxu0 %v329
    %368 = vmatpush.msra.mxu0 %v327
    %369 = vmatpush.msra.mxu0 %v325
    %370 = vmatpush.msra.mxu0 %v323
    %371 = vmatmul.f32.gmra.mxu0 %v318
    %v372 = vpop.f32.mrf.mxu0
    %v373 = vadd.f32 0.0, %v372
    %374 = vmatmul.f32.gmra.mxu0 %v319
    %v375 = vpop.f32.mrf.mxu0
    %v376 = vadd.f32 0.0, %v375
    %377 = vmatmul.f32.gmra.mxu0 %v320
    %v378 = vpop.f32.mrf.mxu0
    %v379 = vadd.f32 0.0, %v378
    %380 = vmatmul.f32.gmra.mxu0 %v321
    %v381 = vpop.f32.mrf.mxu0
    %v382 = vadd.f32 0.0, %v381
    %383 = vdwg.mxu0
    %384 = vmatpush.msra.mxu0 %v354
    %385 = vmatpush.msra.mxu0 %v352
    %386 = vmatpush.msra.mxu0 %v350
    %387 = vmatpush.msra.mxu0 %v348
    %388 = vmatpush.msra.mxu0 %v346
    %389 = vmatpush.msra.mxu0 %v344
    %390 = vmatpush.msra.mxu0 %v342
    %391 = vmatpush.msra.mxu0 %v340
    %392 = vmatpush.msra.mxu0 %v338
    %393 = vmatpush.msra.mxu0 %v336
    %394 = vmatpush.msra.mxu0 %v334
    %395 = vmatpush.msra.mxu0 %v332
    %396 = vmatpush.msra.mxu0 %v330
    %397 = vmatpush.msra.mxu0 %v328
    %398 = vmatpush.msra.mxu0 %v326
    %399 = vmatpush.msra.mxu0 %v324
    %400 = vmatmul.f32.gmra.mxu0 %v318
    %v401 = vpop.f32.mrf.mxu0
    %v402 = vadd.f32 0.0, %v401
    %403 = vmatmul.f32.gmra.mxu0 %v319
    %v404 = vpop.f32.mrf.mxu0
    %v405 = vadd.f32 0.0, %v404
    %406 = vmatmul.f32.gmra.mxu0 %v320
    %v407 = vpop.f32.mrf.mxu0
    %v408 = vadd.f32 0.0, %v407
    %409 = vmatmul.f32.gmra.mxu0 %v321
    %v410 = vpop.f32.mrf.mxu0
    %v411 = vadd.f32 0.0, %v410
    %412 = vdwg.mxu0
    %v413 = vadd.f32 %v278, %v373
    %v414 = vadd.f32 %v307, %v402
    %v415 = vadd.f32 %v281, %v376
    %v416 = vadd.f32 %v310, %v405
    %v417 = vadd.f32 %v284, %v379
    %v418 = vadd.f32 %v313, %v408
    %v419 = vadd.f32 %v287, %v382
    %v420 = vadd.f32 %v316, %v411
    %v421 = vld [vmem:[%s2] sm:$0x1]
    %v423 = vperm.slane %v421, 0
    %v425 = vadd.f32 %v413, %v423
    %v426 = vadd.f32 %v415, %v423
    %v427 = vadd.f32 %v417, %v423
    %v428 = vadd.f32 %v419, %v423
    %v429 = vmax.f32 %v425, 0.0
    %v430 = vmax.f32 %v426, 0.0
    %v431 = vmax.f32 %v427, 0.0
    %v432 = vmax.f32 %v428, 0.0
    %433 = vst [vmem:[#allocation3] sm:$0xff] 0.0
    %434 = vst [vmem:[#allocation3 + $0x8] sm:$0xff] 0.0
    %435 = vst [vmem:[#allocation3 + $0x10] sm:$0xff] 0.0
    %436 = vst [vmem:[#allocation3 + $0x18] sm:$0xff] 0.0
    %437 = vst [vmem:[#allocation3 + $0x20] sm:$0x3] 0.0
    %438 = vst [vmem:[#allocation3 + $0x28] sm:$0x3] 0.0
    %439 = vst [vmem:[#allocation3 + $0x30] sm:$0xff] 0.0
    %440 = vst [vmem:[#allocation3 + $0x38] sm:$0xff] 0.0
    %441 = vst [vmem:[#allocation3 + $0x40] sm:$0xff] 0.0
    %442 = vst [vmem:[#allocation3 + $0x48] sm:$0xff] 0.0
    %443 = vst [vmem:[#allocation3 + $0x50] sm:$0x3] 0.0
    %444 = vst [vmem:[#allocation3 + $0x58] sm:$0x3] 0.0
    %vm449 = vcmask 1040384
    %v450 = vrot.slane %v429, 7
    %v451 = vrot.slane %v430, 7
    %v452 = vsel %vm449, %v450, %v451
    %v453 = vrot.slane %v431, 7
    %v454 = vrot.slane %v432, 7
    %v455 = vsel %vm449, %v453, %v454
    %456 = vrot.lane.b32.xlu0 %v450, 8
    %v457 = vpop.permute.xlu0 %456
    %458 = vrot.lane.b32.xlu0 %v452, 8
    %v459 = vpop.permute.xlu0 %458
    %460 = vrot.lane.b32.xlu0 %v451, 8
    %v461 = vpop.permute.xlu0 %460
    %462 = vrot.lane.b32.xlu0 %v453, 8
    %v463 = vpop.permute.xlu0 %462
    %464 = vrot.lane.b32.xlu0 %v455, 8
    %v465 = vpop.permute.xlu0 %464
    %466 = vrot.lane.b32.xlu0 %v454, 8
    %v467 = vpop.permute.xlu0 %466
    %vm474 = vcmask 1047617
    %475 = vst.msk [vmem:[#allocation3] sm:$0xfe] %vm474, %v457
    %vm476 = vcmask 64513
    %477 = vst.msk [vmem:[#allocation3 + $0x8] sm:$0xfe] %vm476, %v457
    %vm478 = vcmask 1047616
    %479 = vst.msk [vmem:[#allocation3 + $0x10] sm:$0xff] %vm478, %v459
    %vm480 = vcmask 64512
    %481 = vst.msk [vmem:[#allocation3 + $0x18] sm:$0xff] %vm480, %v459
    %vm482 = vcmask 1040448
    %483 = vst.msk [vmem:[#allocation3 + $0x20] sm:$0x1] %vm482, %v461
    %vm484 = vcmask 57344
    %485 = vst.msk [vmem:[#allocation3 + $0x28] sm:$0x1] %vm484, %v461
    %486 = vst.msk [vmem:[#allocation3 + $0x30] sm:$0xfe] %vm474, %v463
    %487 = vst.msk [vmem:[#allocation3 + $0x38] sm:$0xfe] %vm476, %v463
    %488 = vst.msk [vmem:[#allocation3 + $0x40] sm:$0xff] %vm478, %v465
    %489 = vst.msk [vmem:[#allocation3 + $0x48] sm:$0xff] %vm480, %v465
    %490 = vst.msk [vmem:[#allocation3 + $0x50] sm:$0x1] %vm482, %v467
    %491 = vst.msk [vmem:[#allocation3 + $0x58] sm:$0x1] %vm484, %v467
    %v492 = vld [vmem:[#allocation3] sm:$0xff]
    %v493 = vld [vmem:[#allocation3 + $0x8] sm:$0xff]
    %v494 = vld [vmem:[#allocation3 + $0x10] sm:$0xff]
    %v495 = vld [vmem:[#allocation3 + $0x18] sm:$0xff]
    %v496 = vld [vmem:[#allocation3 + $0x30] sm:$0xff]
    %v497 = vld [vmem:[#allocation3 + $0x38] sm:$0xff]
    %v498 = vld [vmem:[#allocation3 + $0x40] sm:$0xff]
    %v499 = vld [vmem:[#allocation3 + $0x48] sm:$0xff]
    %v500 = vld [vmem:[#allocation10] sm:$0xff]
    %v501 = vld [vmem:[#allocation10 + $0x8] sm:$0xff]
    %v502 = vld [vmem:[#allocation10 + $0x10] sm:$0xff]
    %v503 = vld [vmem:[#allocation10 + $0x18] sm:$0xff]
    %v504 = vld [vmem:[#allocation10 + $0x20] sm:$0xff]
    %v505 = vld [vmem:[#allocation10 + $0x28] sm:$0xff]
    %v506 = vld [vmem:[#allocation10 + $0x30] sm:$0xff]
    %v507 = vld [vmem:[#allocation10 + $0x38] sm:$0xff]
    %v508 = vld [vmem:[#allocation10 + $0x40] sm:$0xff]
    %v509 = vld [vmem:[#allocation10 + $0x48] sm:$0xff]
    %v510 = vld [vmem:[#allocation10 + $0x50] sm:$0xff]
    %v511 = vld [vmem:[#allocation10 + $0x58] sm:$0xff]
    %v512 = vld [vmem:[#allocation10 + $0x60] sm:$0xff]
    %v513 = vld [vmem:[#allocation10 + $0x68] sm:$0xff]
    %v514 = vld [vmem:[#allocation10 + $0x70] sm:$0xff]
    %v515 = vld [vmem:[#allocation10 + $0x78] sm:$0xff]
    %v516 = vld [vmem:[#allocation10 + $0x80] sm:$0xff]
    %v517 = vld [vmem:[#allocation10 + $0x88] sm:$0xff]
    %v518 = vld [vmem:[#allocation10 + $0x90] sm:$0xff]
    %v519 = vld [vmem:[#allocation10 + $0x98] sm:$0xff]
    %v520 = vld [vmem:[#allocation10 + $0xa0] sm:$0xff]
    %v521 = vld [vmem:[#allocation10 + $0xa8] sm:$0xff]
    %v522 = vld [vmem:[#allocation10 + $0xb0] sm:$0xff]
    %v523 = vld [vmem:[#allocation10 + $0xb8] sm:$0xff]
    %v524 = vld [vmem:[#allocation10 + $0xc0] sm:$0xff]
    %v525 = vld [vmem:[#allocation10 + $0xc8] sm:$0xff]
    %v526 = vld [vmem:[#allocation10 + $0xd0] sm:$0xff]
    %v527 = vld [vmem:[#allocation10 + $0xd8] sm:$0xff]
    %v528 = vld [vmem:[#allocation10 + $0xe0] sm:$0xff]
    %v529 = vld [vmem:[#allocation10 + $0xe8] sm:$0xff]
    %v530 = vld [vmem:[#allocation10 + $0xf0] sm:$0xff]
    %v531 = vld [vmem:[#allocation10 + $0xf8] sm:$0xff]
    %532 = vmatpush.msra.mxu0 %v515
    %533 = vmatpush.msra.mxu0 %v514
    %534 = vmatpush.msra.mxu0 %v513
    %535 = vmatpush.msra.mxu0 %v512
    %536 = vmatpush.msra.mxu0 %v511
    %537 = vmatpush.msra.mxu0 %v510
    %538 = vmatpush.msra.mxu0 %v509
    %539 = vmatpush.msra.mxu0 %v508
    %540 = vmatpush.msra.mxu0 %v507
    %541 = vmatpush.msra.mxu0 %v506
    %542 = vmatpush.msra.mxu0 %v505
    %543 = vmatpush.msra.mxu0 %v504
    %544 = vmatpush.msra.mxu0 %v503
    %545 = vmatpush.msra.mxu0 %v502
    %546 = vmatpush.msra.mxu0 %v501
    %547 = vmatpush.msra.mxu0 %v500
    %548 = vmatmul.f32.gmra.mxu0 %v492
    %v549 = vpop.f32.mrf.mxu0
    %v550 = vadd.f32 0.0, %v549
    %551 = vmatmul.f32.gmra.mxu0 %v494
    %v552 = vpop.f32.mrf.mxu0
    %v553 = vadd.f32 0.0, %v552
    %554 = vmatmul.f32.gmra.mxu0 %v496
    %v555 = vpop.f32.mrf.mxu0
    %v556 = vadd.f32 0.0, %v555
    %557 = vmatmul.f32.gmra.mxu0 %v498
    %v558 = vpop.f32.mrf.mxu0
    %v559 = vadd.f32 0.0, %v558
    %560 = vdwg.mxu0
    %561 = vmatpush.msra.mxu0 %v531
    %562 = vmatpush.msra.mxu0 %v530
    %563 = vmatpush.msra.mxu0 %v529
    %564 = vmatpush.msra.mxu0 %v528
    %565 = vmatpush.msra.mxu0 %v527
    %566 = vmatpush.msra.mxu0 %v526
    %567 = vmatpush.msra.mxu0 %v525
    %568 = vmatpush.msra.mxu0 %v524
    %569 = vmatpush.msra.mxu0 %v523
    %570 = vmatpush.msra.mxu0 %v522
    %571 = vmatpush.msra.mxu0 %v521
    %572 = vmatpush.msra.mxu0 %v520
    %573 = vmatpush.msra.mxu0 %v519
    %574 = vmatpush.msra.mxu0 %v518
    %575 = vmatpush.msra.mxu0 %v517
    %576 = vmatpush.msra.mxu0 %v516
    %577 = vmatmul.f32.gmra.mxu0 %v493
    %v578 = vpop.f32.mrf.mxu0
    %v579 = vadd.f32 %v550, %v578
    %580 = vmatmul.f32.gmra.mxu0 %v495
    %v581 = vpop.f32.mrf.mxu0
    %v582 = vadd.f32 %v553, %v581
    %583 = vmatmul.f32.gmra.mxu0 %v497
    %v584 = vpop.f32.mrf.mxu0
    %v585 = vadd.f32 %v556, %v584
    %586 = vmatmul.f32.gmra.mxu0 %v499
    %v587 = vpop.f32.mrf.mxu0
    %v588 = vadd.f32 %v559, %v587
    %589 = vdwg.mxu0
    %v590 = vadd.f32 %v414, %v579
    %v591 = vadd.f32 %v416, %v582
    %v592 = vadd.f32 %v418, %v585
    %v593 = vadd.f32 %v420, %v588
    %v594 = vld [vmem:[#allocation3] sm:$0xfe]
    %v595 = vld [vmem:[#allocation3 + $0x8] sm:$0xfe]
    %v596 = vld [vmem:[#allocation3 + $0x10] sm:$0xff]
    %v597 = vld [vmem:[#allocation3 + $0x18] sm:$0xff]
    %v598 = vld [vmem:[#allocation3 + $0x20] sm:$0x1]
    %v599 = vld [vmem:[#allocation3 + $0x28] sm:$0x1]
    %v600 = vld [vmem:[#allocation3 + $0x30] sm:$0xfe]
    %v601 = vld [vmem:[#allocation3 + $0x38] sm:$0xfe]
    %v602 = vld [vmem:[#allocation3 + $0x40] sm:$0xff]
    %v603 = vld [vmem:[#allocation3 + $0x48] sm:$0xff]
    %v604 = vld [vmem:[#allocation3 + $0x50] sm:$0x1]
    %v605 = vld [vmem:[#allocation3 + $0x58] sm:$0x1]
    %vm618 = vcmask 1046528
    %v619 = vrot.slane %v594, 1
    %v620 = vrot.slane %v596, 1
    %v621 = vsel %vm618, %v619, %v620
    %v622 = vrot.slane %v595, 1
    %v623 = vrot.slane %v597, 1
    %v624 = vsel %vm618, %v622, %v623
    %v625 = vrot.slane %v598, 1
    %v626 = vsel %vm618, %v620, %v625
    %v627 = vrot.slane %v599, 1
    %v628 = vsel %vm618, %v623, %v627
    %v629 = vrot.slane %v600, 1
    %v630 = vrot.slane %v602, 1
    %v631 = vsel %vm618, %v629, %v630
    %v632 = vrot.slane %v601, 1
    %v633 = vrot.slane %v603, 1
    %v634 = vsel %vm618, %v632, %v633
    %v635 = vrot.slane %v604, 1
    %v636 = vsel %vm618, %v630, %v635
    %v637 = vrot.slane %v605, 1
    %v638 = vsel %vm618, %v633, %v637
    %s647 = scalar_lea.vmem [#allocation10], 256
    %v648 = vld [vmem:[%s647] sm:$0xff]
    %v649 = vld [vmem:[%s647 + $0x8] sm:$0xff]
    %v650 = vld [vmem:[%s647 + $0x10] sm:$0xff]
    %v651 = vld [vmem:[%s647 + $0x18] sm:$0xff]
    %v652 = vld [vmem:[%s647 + $0x20] sm:$0xff]
    %v653 = vld [vmem:[%s647 + $0x28] sm:$0xff]
    %v654 = vld [vmem:[%s647 + $0x30] sm:$0xff]
    %v655 = vld [vmem:[%s647 + $0x38] sm:$0xff]
    %v656 = vld [vmem:[%s647 + $0x40] sm:$0xff]
    %v657 = vld [vmem:[%s647 + $0x48] sm:$0xff]
    %v658 = vld [vmem:[%s647 + $0x50] sm:$0xff]
    %v659 = vld [vmem:[%s647 + $0x58] sm:$0xff]
    %v660 = vld [vmem:[%s647 + $0x60] sm:$0xff]
    %v661 = vld [vmem:[%s647 + $0x68] sm:$0xff]
    %v662 = vld [vmem:[%s647 + $0x70] sm:$0xff]
    %v663 = vld [vmem:[%s647 + $0x78] sm:$0xff]
    %v664 = vld [vmem:[%s647 + $0x80] sm:$0xff]
    %v665 = vld [vmem:[%s647 + $0x88] sm:$0xff]
    %v666 = vld [vmem:[%s647 + $0x90] sm:$0xff]
    %v667 = vld [vmem:[%s647 + $0x98] sm:$0xff]
    %v668 = vld [vmem:[%s647 + $0xa0] sm:$0xff]
    %v669 = vld [vmem:[%s647 + $0xa8] sm:$0xff]
    %v670 = vld [vmem:[%s647 + $0xb0] sm:$0xff]
    %v671 = vld [vmem:[%s647 + $0xb8] sm:$0xff]
    %v672 = vld [vmem:[%s647 + $0xc0] sm:$0xff]
    %v673 = vld [vmem:[%s647 + $0xc8] sm:$0xff]
    %v674 = vld [vmem:[%s647 + $0xd0] sm:$0xff]
    %v675 = vld [vmem:[%s647 + $0xd8] sm:$0xff]
    %v676 = vld [vmem:[%s647 + $0xe0] sm:$0xff]
    %v677 = vld [vmem:[%s647 + $0xe8] sm:$0xff]
    %v678 = vld [vmem:[%s647 + $0xf0] sm:$0xff]
    %v679 = vld [vmem:[%s647 + $0xf8] sm:$0xff]
    %680 = vmatpush.msra.mxu0 %v663
    %681 = vmatpush.msra.mxu0 %v662
    %682 = vmatpush.msra.mxu0 %v661
    %683 = vmatpush.msra.mxu0 %v660
    %684 = vmatpush.msra.mxu0 %v659
    %685 = vmatpush.msra.mxu0 %v658
    %686 = vmatpush.msra.mxu0 %v657
    %687 = vmatpush.msra.mxu0 %v656
    %688 = vmatpush.msra.mxu0 %v655
    %689 = vmatpush.msra.mxu0 %v654
    %690 = vmatpush.msra.mxu0 %v653
    %691 = vmatpush.msra.mxu0 %v652
    %692 = vmatpush.msra.mxu0 %v651
    %693 = vmatpush.msra.mxu0 %v650
    %694 = vmatpush.msra.mxu0 %v649
    %695 = vmatpush.msra.mxu0 %v648
    %696 = vmatmul.f32.gmra.mxu0 %v621
    %v697 = vpop.f32.mrf.mxu0
    %v698 = vadd.f32 0.0, %v697
    %699 = vmatmul.f32.gmra.mxu0 %v626
    %v700 = vpop.f32.mrf.mxu0
    %v701 = vadd.f32 0.0, %v700
    %702 = vmatmul.f32.gmra.mxu0 %v631
    %v703 = vpop.f32.mrf.mxu0
    %v704 = vadd.f32 0.0, %v703
    %705 = vmatmul.f32.gmra.mxu0 %v636
    %v706 = vpop.f32.mrf.mxu0
    %v707 = vadd.f32 0.0, %v706
    %708 = vdwg.mxu0
    %709 = vmatpush.msra.mxu0 %v679
    %710 = vmatpush.msra.mxu0 %v678
    %711 = vmatpush.msra.mxu0 %v677
    %712 = vmatpush.msra.mxu0 %v676
    %713 = vmatpush.msra.mxu0 %v675
    %714 = vmatpush.msra.mxu0 %v674
    %715 = vmatpush.msra.mxu0 %v673
    %716 = vmatpush.msra.mxu0 %v672
    %717 = vmatpush.msra.mxu0 %v671
    %718 = vmatpush.msra.mxu0 %v670
    %719 = vmatpush.msra.mxu0 %v669
    %720 = vmatpush.msra.mxu0 %v668
    %721 = vmatpush.msra.mxu0 %v667
    %722 = vmatpush.msra.mxu0 %v666
    %723 = vmatpush.msra.mxu0 %v665
    %724 = vmatpush.msra.mxu0 %v664
    %725 = vmatmul.f32.gmra.mxu0 %v624
    %v726 = vpop.f32.mrf.mxu0
    %v727 = vadd.f32 %v698, %v726
    %728 = vmatmul.f32.gmra.mxu0 %v628
    %v729 = vpop.f32.mrf.mxu0
    %v730 = vadd.f32 %v701, %v729
    %731 = vmatmul.f32.gmra.mxu0 %v634
    %v732 = vpop.f32.mrf.mxu0
    %v733 = vadd.f32 %v704, %v732
    %734 = vmatmul.f32.gmra.mxu0 %v638
    %v735 = vpop.f32.mrf.mxu0
    %v736 = vadd.f32 %v707, %v735
    %737 = vdwg.mxu0
    %v738 = vadd.f32 %v590, %v727
    %v739 = vadd.f32 %v591, %v730
    %v740 = vadd.f32 %v592, %v733
    %v741 = vadd.f32 %v593, %v736
    %v742 = vld [vmem:[#allocation3] sm:$0xfc]
    %v743 = vld [vmem:[#allocation3 + $0x8] sm:$0xfc]
    %v744 = vld [vmem:[#allocation3 + $0x20] sm:$0x3]
    %v745 = vld [vmem:[#allocation3 + $0x28] sm:$0x3]
    %v746 = vld [vmem:[#allocation3 + $0x30] sm:$0xfc]
    %v747 = vld [vmem:[#allocation3 + $0x38] sm:$0xfc]
    %v748 = vld [vmem:[#allocation3 + $0x50] sm:$0x3]
    %v749 = vld [vmem:[#allocation3 + $0x58] sm:$0x3]
    %vm758 = vcmask 1045504
    %v759 = vrot.slane %v742, 2
    %v760 = vrot.slane %v596, 2
    %v761 = vsel %vm758, %v759, %v760
    %v762 = vrot.slane %v743, 2
    %v763 = vrot.slane %v597, 2
    %v764 = vsel %vm758, %v762, %v763
    %v765 = vrot.slane %v744, 2
    %v766 = vsel %vm758, %v760, %v765
    %v767 = vrot.slane %v745, 2
    %v768 = vsel %vm758, %v763, %v767
    %v769 = vrot.slane %v746, 2
    %v770 = vrot.slane %v602, 2
    %v771 = vsel %vm758, %v769, %v770
    %v772 = vrot.slane %v747, 2
    %v773 = vrot.slane %v603, 2
    %v774 = vsel %vm758, %v772, %v773
    %v775 = vrot.slane %v748, 2
    %v776 = vsel %vm758, %v770, %v775
    %v777 = vrot.slane %v749, 2
    %v778 = vsel %vm758, %v773, %v777
    %s787 = scalar_lea.vmem [#allocation10], 512
    %v788 = vld [vmem:[%s787] sm:$0xff]
    %v789 = vld [vmem:[%s787 + $0x8] sm:$0xff]
    %v790 = vld [vmem:[%s787 + $0x10] sm:$0xff]
    %v791 = vld [vmem:[%s787 + $0x18] sm:$0xff]
    %v792 = vld [vmem:[%s787 + $0x20] sm:$0xff]
    %v793 = vld [vmem:[%s787 + $0x28] sm:$0xff]
    %v794 = vld [vmem:[%s787 + $0x30] sm:$0xff]
    %v795 = vld [vmem:[%s787 + $0x38] sm:$0xff]
    %v796 = vld [vmem:[%s787 + $0x40] sm:$0xff]
    %v797 = vld [vmem:[%s787 + $0x48] sm:$0xff]
    %v798 = vld [vmem:[%s787 + $0x50] sm:$0xff]
    %v799 = vld [vmem:[%s787 + $0x58] sm:$0xff]
    %v800 = vld [vmem:[%s787 + $0x60] sm:$0xff]
    %v801 = vld [vmem:[%s787 + $0x68] sm:$0xff]
    %v802 = vld [vmem:[%s787 + $0x70] sm:$0xff]
    %v803 = vld [vmem:[%s787 + $0x78] sm:$0xff]
    %v804 = vld [vmem:[%s787 + $0x80] sm:$0xff]
    %v805 = vld [vmem:[%s787 + $0x88] sm:$0xff]
    %v806 = vld [vmem:[%s787 + $0x90] sm:$0xff]
    %v807 = vld [vmem:[%s787 + $0x98] sm:$0xff]
    %v808 = vld [vmem:[%s787 + $0xa0] sm:$0xff]
    %v809 = vld [vmem:[%s787 + $0xa8] sm:$0xff]
    %v810 = vld [vmem:[%s787 + $0xb0] sm:$0xff]
    %v811 = vld [vmem:[%s787 + $0xb8] sm:$0xff]
    %v812 = vld [vmem:[%s787 + $0xc0] sm:$0xff]
    %v813 = vld [vmem:[%s787 + $0xc8] sm:$0xff]
    %v814 = vld [vmem:[%s787 + $0xd0] sm:$0xff]
    %v815 = vld [vmem:[%s787 + $0xd8] sm:$0xff]
    %v816 = vld [vmem:[%s787 + $0xe0] sm:$0xff]
    %v817 = vld [vmem:[%s787 + $0xe8] sm:$0xff]
    %v818 = vld [vmem:[%s787 + $0xf0] sm:$0xff]
    %v819 = vld [vmem:[%s787 + $0xf8] sm:$0xff]
    %820 = vmatpush.msra.mxu0 %v803
    %821 = vmatpush.msra.mxu0 %v802
    %822 = vmatpush.msra.mxu0 %v801
    %823 = vmatpush.msra.mxu0 %v800
    %824 = vmatpush.msra.mxu0 %v799
    %825 = vmatpush.msra.mxu0 %v798
    %826 = vmatpush.msra.mxu0 %v797
    %827 = vmatpush.msra.mxu0 %v796
    %828 = vmatpush.msra.mxu0 %v795
    %829 = vmatpush.msra.mxu0 %v794
    %830 = vmatpush.msra.mxu0 %v793
    %831 = vmatpush.msra.mxu0 %v792
    %832 = vmatpush.msra.mxu0 %v791
    %833 = vmatpush.msra.mxu0 %v790
    %834 = vmatpush.msra.mxu0 %v789
    %835 = vmatpush.msra.mxu0 %v788
    %836 = vmatmul.f32.gmra.mxu0 %v761
    %v837 = vpop.f32.mrf.mxu0
    %v838 = vadd.f32 0.0, %v837
    %839 = vmatmul.f32.gmra.mxu0 %v766
    %v840 = vpop.f32.mrf.mxu0
    %v841 = vadd.f32 0.0, %v840
    %842 = vmatmul.f32.gmra.mxu0 %v771
    %v843 = vpop.f32.mrf.mxu0
    %v844 = vadd.f32 0.0, %v843
    %845 = vmatmul.f32.gmra.mxu0 %v776
    %v846 = vpop.f32.mrf.mxu0
    %v847 = vadd.f32 0.0, %v846
    %848 = vdwg.mxu0
    %849 = vmatpush.msra.mxu0 %v819
    %850 = vmatpush.msra.mxu0 %v818
    %851 = vmatpush.msra.mxu0 %v817
    %852 = vmatpush.msra.mxu0 %v816
    %853 = vmatpush.msra.mxu0 %v815
    %854 = vmatpush.msra.mxu0 %v814
    %855 = vmatpush.msra.mxu0 %v813
    %856 = vmatpush.msra.mxu0 %v812
    %857 = vmatpush.msra.mxu0 %v811
    %858 = vmatpush.msra.mxu0 %v810
    %859 = vmatpush.msra.mxu0 %v809
    %860 = vmatpush.msra.mxu0 %v808
    %861 = vmatpush.msra.mxu0 %v807
    %862 = vmatpush.msra.mxu0 %v806
    %863 = vmatpush.msra.mxu0 %v805
    %864 = vmatpush.msra.mxu0 %v804
    %865 = vmatmul.f32.gmra.mxu0 %v764
    %v866 = vpop.f32.mrf.mxu0
    %v867 = vadd.f32 %v838, %v866
    %868 = vmatmul.f32.gmra.mxu0 %v768
    %v869 = vpop.f32.mrf.mxu0
    %v870 = vadd.f32 %v841, %v869
    %871 = vmatmul.f32.gmra.mxu0 %v774
    %v872 = vpop.f32.mrf.mxu0
    %v873 = vadd.f32 %v844, %v872
    %874 = vmatmul.f32.gmra.mxu0 %v778
    %v875 = vpop.f32.mrf.mxu0
    %v876 = vadd.f32 %v847, %v875
    %877 = vdwg.mxu0
    %v878 = vadd.f32 %v738, %v867
    %v879 = vadd.f32 %v739, %v870
    %v880 = vadd.f32 %v740, %v873
    %v881 = vadd.f32 %v741, %v876
    %882 = vst [vmem:[#allocation12] sm:$0xff] %v878
    %883 = vst [vmem:[#allocation12 + $0x8] sm:$0xff] %v879
    %884 = vst [vmem:[#allocation12 + $0x10] sm:$0xff] %v880
    %885 = vst [vmem:[#allocation12 + $0x18] sm:$0xff] %v881
    // Predicated region
    $region38: #{tpu_custom_call.1} parent=1 // pred_check
      _
    $region39: #{tpu_custom_call.1} parent=1 // pred_check_branch
      %887 = sbr.rel (0) target = $region41
    $region40: #{tpu_custom_call.1} parent=1 // pred_region
      %889 = vsyncadd [#allocation6], 0
      %s890 = sshll.u32 [#allocation12], 4
      %s891 = int_to_ptr.vmem [resolvable:$true] %s890
      %s892 = sshll.u32 %s5, 4
      %s893 = int_to_ptr.hbm [resolvable:$true] %s892
      %898 = dma.vmem_to_hbm [thread:$0]  %s891, 512, %s893, [#allocation6], 128, 128, 8
    $region41: #{tpu_custom_call.1} parent=1 // pred_fallthru
      _
    // Predicated region
    $region42: #{tpu_custom_call.1} parent=1 // pred_check
      _
    $region43: #{tpu_custom_call.1} parent=1 // pred_check_branch
      %900 = sbr.rel (0) target = $region45
    $region44: #{tpu_custom_call.1} parent=1 // pred_region
      %902 = dma.done [#allocation6], 512
    $region45: #{tpu_custom_call.1} parent=1 // pred_fallthru
      _
    %903 = vsyncpa [#allocation5], 1
    %904 = vsyncpa [#allocation8], 1
    %905 = vsyncpa [#allocation11], 1
    %906 = vsyncpa [#allocation6], 1

</llo_original>
